<compile_context>
chip_gen: v7x
topology: tpu7x:2x2x1
jax: 0.10.0
libtpu: 0.0.40
codegen_flags: <defaults>
</compile_context>

<pallas_src>
import jax
import jax.numpy as jnp
from jax.experimental import pallas as pl
from jax.experimental.pallas import tpu as pltpu

LANE = 128                      # TPU lane width; feature axes padded to this on-chip only
D_IN, D_H1, D_H2, D_OUT = 10, 50, 20, 5


def _round_up(x, m):
    return (x + m - 1) // m * m


def mlp_kernel(x_ref, w_ref, b_ref, o_ref):
    """One (TILE_B,) batch tile of the fused 3-layer MLP.

    x_ref : [TILE_B, 10]   narrow input block (native width, 40 B/row DMA)
    w_ref : [128, 384]     packed zero-padded [W1 | W2 | W3]  (VMEM-resident)
    b_ref : [1, 384]       packed zero-padded [b1 | b2 | b3]  (VMEM-resident)
    o_ref : [TILE_B, 5]    narrow output block (native width, 20 B/row DMA)
    """
    x = x_ref[...]
    # Zero-pad features 10 -> 128 in-register (W1 rows >= D_IN are zero too),
    # so all three matmuls are fully 128-aligned MXU ops.
    xp = jnp.concatenate(
        [x, jnp.zeros((x_ref.shape[0], LANE - D_IN), jnp.float32)], axis=-1)

    h1 = jnp.dot(xp, w_ref[:, 0:LANE],
                 preferred_element_type=jnp.float32) + b_ref[:, 0:LANE]
    h1 = jnp.maximum(h1, 0.0)
    h2 = jnp.dot(h1, w_ref[:, LANE:2 * LANE],
                 preferred_element_type=jnp.float32) + b_ref[:, LANE:2 * LANE]
    h2 = jnp.maximum(h2, 0.0)
    y = jnp.dot(h2, w_ref[:, 2 * LANE:3 * LANE],
                preferred_element_type=jnp.float32) + b_ref[:, 2 * LANE:3 * LANE]

    # Store only the 5 real output columns (masked vst; HBM writeback 20 B/row).
    o_ref[...] = y[:, :D_OUT]


def pack_params(params):
    """Zero-pad each layer to 128x128 / 1x128 and pack into two VMEM slabs."""
    w1, b1, w2, b2, w3, b3 = params

    def pad_w(w):
        fi, fo = w.shape
        return jnp.pad(w, ((0, LANE - fi), (0, LANE - fo)))

    def pad_b(b):
        b = b.reshape(1, -1)
        return jnp.pad(b, ((0, 0), (0, LANE - b.shape[1])))

    w_slab = jnp.concatenate([pad_w(w1), pad_w(w2), pad_w(w3)], axis=1)  # [128, 384]
    b_slab = jnp.concatenate([pad_b(b1), pad_b(b2), pad_b(b3)], axis=1)  # [1, 384]
    return w_slab.astype(jnp.float32), b_slab.astype(jnp.float32)


def _choose_tiling(batch, max_tile=2048, min_grid=2):
    """Pick (tile, padded_batch, n_tiles).

    * pad batch only to a multiple of 8 sublanes (+ <=8 rows/tile so the grid
      divides evenly) -- no dead 256-row padding.
    * tile up to `max_tile` rows to amortize the ~0.35us per-grid-step cost.
    * keep >= `min_grid` tiles when batch allows, so v7x's second TensorCore
      has work under dimension_semantics=("parallel",).
    """
    b8 = _round_up(max(batch, 1), 8)
    n_tiles = max(1, -(-b8 // max_tile))            # ceil-div
    if n_tiles < min_grid <= b8 // 8:
        n_tiles = min_grid
    tile = _round_up(-(-b8 // n_tiles), 8)
    return tile, tile * n_tiles, n_tiles


def simple_mlp_forward(x, params, *, max_tile=2048):
    assert x.ndim == 2 and x.shape[1] == D_IN, f"expected (B, {D_IN}), got {x.shape}"
    w_slab, b_slab = pack_params(params)

    B = x.shape[0]
    tile, b_pad, n_tiles = _choose_tiling(B, max_tile)
    x = x.astype(jnp.float32)
    if b_pad != B:
        x = jnp.pad(x, ((0, b_pad - B), (0, 0)))    # batch-row pad only

    # Advisory cost: actual (lane-padded) MXU flops, narrow HBM traffic.
    flops = 2 * b_pad * LANE * LANE * 3
    bytes_accessed = 4 * (b_pad * D_IN + b_pad * D_OUT + w_slab.size + b_slab.size)

    out = pl.pallas_call(
        mlp_kernel,
        out_shape=jax.ShapeDtypeStruct((b_pad, D_OUT), jnp.float32),
        grid=(n_tiles,),
        in_specs=[
            pl.BlockSpec((tile, D_IN), lambda i: (i, 0)),       # x: streamed, native width
            pl.BlockSpec((LANE, 3 * LANE), lambda i: (0, 0)),   # weight slab: resident
            pl.BlockSpec((1, 3 * LANE), lambda i: (0, 0)),      # bias slab: resident
        ],
        out_specs=pl.BlockSpec((tile, D_OUT), lambda i: (i, 0)),
        compiler_params=pltpu.CompilerParams(
            dimension_semantics=("parallel",)),
        cost_estimate=pl.CostEstimate(
            flops=flops, transcendentals=0, bytes_accessed=bytes_accessed),
    )(x, w_slab, b_slab)

    return out[:B] if b_pad != B else out


def init_params(key):
    """Deterministic init mirroring nn.Linear shapes (stored as [in, out])."""
    dims = [(D_IN, D_H1), (D_H1, D_H2), (D_H2, D_OUT)]
    params = []
    for i, (fan_in, fan_out) in enumerate(dims):
        kw, kb = jax.random.split(jax.random.fold_in(key, i))
        bound = 1.0 / jnp.sqrt(fan_in)
        w = jax.random.uniform(kw, (fan_in, fan_out), jnp.float32, -bound, bound)
        b = jax.random.uniform(kb, (fan_out,), jnp.float32, -bound, bound)
        params.extend([w, b])
    return tuple(params)


def reference_forward(x, params):
    w1, b1, w2, b2, w3, b3 = params
    h1 = jnp.maximum(x @ w1 + b1, 0.0)
    h2 = jnp.maximum(h1 @ w2 + b2, 0.0)
    return h2 @ w3 + b3


if __name__ == "__main__":
    key = jax.random.PRNGKey(0)
    kx, kp = jax.random.split(key)
    params = init_params(kp)

    # Small case (matches the module spec): batch=2, features=10.
    x_small = jax.random.normal(kx, (2, D_IN), dtype=jnp.float32)
    out_small = jax.block_until_ready(simple_mlp_forward(x_small, params))
    ref_small = reference_forward(x_small, params)
    assert out_small.shape == (2, D_OUT)
    assert jnp.allclose(out_small, ref_small, atol=1e-5, rtol=1e-5)

    # Larger, non-aligned batch: exercises minimal batch padding + 2-tile grid.
    x_big = jax.random.normal(jax.random.fold_in(kx, 1), (300, D_IN), dtype=jnp.float32)
    out_big = jax.block_until_ready(simple_mlp_forward(x_big, params))
    ref_big = reference_forward(x_big, params)
    assert out_big.shape == (300, D_OUT)
    assert jnp.allclose(out_big, ref_big, atol=1e-5, rtol=1e-5)

    print("KERNEL_OK")
</pallas_src>

<mosaic_0001>
module attributes {stable_mosaic.version = 11 : i64} {
  func.func @mlp_kernel(%arg0: i32, %arg1: memref<8x10xf32, #tpu.memory_space<vmem>>, %arg2: memref<128x384xf32, #tpu.memory_space<vmem>>, %arg3: memref<1x384xf32, #tpu.memory_space<vmem>>, %arg4: memref<8x5xf32, #tpu.memory_space<vmem>>) attributes {dimension_semantics = [#tpu.dimension_semantics<parallel>], iteration_bounds = array<i64: 1>, scalar_prefetch = 0 : i64, scratch_operands = 0 : i64, tpu.core_type = #tpu.core_type<tc>, window_params = [{transform_indices = @transform_0, window_bounds = array<i64: 8, 10>}, {pipeline_mode = #tpu.pipeline_mode<synchronous>, transform_indices = @transform_1, window_bounds = array<i64: 128, 384>}, {pipeline_mode = #tpu.pipeline_mode<synchronous>, transform_indices = @transform_2, window_bounds = array<i64: 1, 384>}, {transform_indices = @transform_3, window_bounds = array<i64: 8, 5>}]} {
    %c0 = arith.constant 0 : index
    %c0_0 = arith.constant 0 : index
    %0 = vector.load %arg1[%c0, %c0_0] : memref<8x10xf32, #tpu.memory_space<vmem>>, vector<8x10xf32>
    %cst = arith.constant 0.000000e+00 : f32
    %1 = vector.broadcast %cst : f32 to vector<8x118xf32>
    %2 = tpu.concatenate %0, %1 in 1 : vector<8x10xf32>, vector<8x118xf32> -> vector<8x128xf32>
    %c0_1 = arith.constant 0 : index
    %c0_2 = arith.constant 0 : index
    %3 = vector.load %arg2[%c0_1, %c0_2] : memref<128x384xf32, #tpu.memory_space<vmem>>, vector<128x128xf32>
    %cst_3 = arith.constant dense<0.000000e+00> : vector<8x128xf32>
    %4 = tpu.matmul %2, %3, %cst_3 {dimension_numbers = #tpu.dot_dimension_numbers<[1], [0], [0], [1], [0, 0, 1, 1], [], []>} : vector<8x128xf32>, vector<128x128xf32>, vector<8x128xf32> -> vector<8x128xf32>
    %c0_4 = arith.constant 0 : index
    %c0_5 = arith.constant 0 : index
    %5 = vector.load %arg3[%c0_4, %c0_5] : memref<1x384xf32, #tpu.memory_space<vmem>>, vector<1x128xf32>
    %6 = vector.broadcast %5 : vector<1x128xf32> to vector<8x128xf32>
    %7 = arith.addf %4, %6 : vector<8x128xf32>
    %cst_6 = arith.constant 0.000000e+00 : f32
    %8 = vector.broadcast %cst_6 : f32 to vector<8x128xf32>
    %9 = arith.maximumf %7, %8 : vector<8x128xf32>
    %c0_7 = arith.constant 0 : index
    %c128 = arith.constant 128 : index
    %10 = vector.load %arg2[%c0_7, %c128] : memref<128x384xf32, #tpu.memory_space<vmem>>, vector<128x128xf32>
    %cst_8 = arith.constant dense<0.000000e+00> : vector<8x128xf32>
    %11 = tpu.matmul %9, %10, %cst_8 {dimension_numbers = #tpu.dot_dimension_numbers<[1], [0], [0], [1], [0, 0, 1, 1], [], []>} : vector<8x128xf32>, vector<128x128xf32>, vector<8x128xf32> -> vector<8x128xf32>
    %c0_9 = arith.constant 0 : index
    %c128_10 = arith.constant 128 : index
    %12 = vector.load %arg3[%c0_9, %c128_10] : memref<1x384xf32, #tpu.memory_space<vmem>>, vector<1x128xf32>
    %13 = vector.broadcast %12 : vector<1x128xf32> to vector<8x128xf32>
    %14 = arith.addf %11, %13 : vector<8x128xf32>
    %cst_11 = arith.constant 0.000000e+00 : f32
    %15 = vector.broadcast %cst_11 : f32 to vector<8x128xf32>
    %16 = arith.maximumf %14, %15 : vector<8x128xf32>
    %c0_12 = arith.constant 0 : index
    %c256 = arith.constant 256 : index
    %17 = vector.load %arg2[%c0_12, %c256] : memref<128x384xf32, #tpu.memory_space<vmem>>, vector<128x128xf32>
    %cst_13 = arith.constant dense<0.000000e+00> : vector<8x128xf32>
    %18 = tpu.matmul %16, %17, %cst_13 {dimension_numbers = #tpu.dot_dimension_numbers<[1], [0], [0], [1], [0, 0, 1, 1], [], []>} : vector<8x128xf32>, vector<128x128xf32>, vector<8x128xf32> -> vector<8x128xf32>
    %c0_14 = arith.constant 0 : index
    %c256_15 = arith.constant 256 : index
    %19 = vector.load %arg3[%c0_14, %c256_15] : memref<1x384xf32, #tpu.memory_space<vmem>>, vector<1x128xf32>
    %20 = vector.broadcast %19 : vector<1x128xf32> to vector<8x128xf32>
    %21 = arith.addf %18, %20 : vector<8x128xf32>
    %22 = vector.extract_strided_slice %21 {offsets = [0, 0], sizes = [8, 5], strides = [1, 1]} : vector<8x128xf32> to vector<8x5xf32>
    %c0_16 = arith.constant 0 : index
    %c0_17 = arith.constant 0 : index
    %23 = vector.load %arg4[%c0_16, %c0_17] : memref<8x5xf32, #tpu.memory_space<vmem>>, vector<8x5xf32>
    tpu.vector_store %arg4[%c0_16, %c0_17], %22 {strides = array<i32>} : memref<8x5xf32, #tpu.memory_space<vmem>>, vector<8x5xf32>,
    return
  }
  func.func @transform_0(%arg0: i32) -> (i32, i32) {
    %c0_i32 = arith.constant 0 : i32
    %c0_i32_0 = arith.constant 0 : i32
    return %arg0, %c0_i32 : i32, i32
  }
  func.func @transform_1(%arg0: i32) -> (i32, i32) {
    %c0_i32 = arith.constant 0 : i32
    %c0_i32_0 = arith.constant 0 : i32
    %c0_i32_1 = arith.constant 0 : i32
    return %c0_i32, %c0_i32_0 : i32, i32
  }
  func.func @transform_2(%arg0: i32) -> (i32, i32) {
    %c0_i32 = arith.constant 0 : i32
    %c0_i32_0 = arith.constant 0 : i32
    %c0_i32_1 = arith.constant 0 : i32
    return %c0_i32, %c0_i32_0 : i32, i32
  }
  func.func @transform_3(%arg0: i32) -> (i32, i32) {
    %c0_i32 = arith.constant 0 : i32
    %c0_i32_0 = arith.constant 0 : i32
    return %arg0, %c0_i32 : i32, i32
  }
}

</mosaic_0001>

<llo_original>
// kernel: tpu_custom_call.1
$region0: #{tpu_custom_call.1}
  #allocation0 [shape = 'u32[]', space=smem, size = 0x4, offset = 0x4, fixed_abs, tag = 'smem constant byte address 0x4 - core index']
  #allocation1 [shape = 'u32[144,128]{1,0:T(1,128)}', space=vmem, size = 0x12000, scoped, tag = 'internal scratch']
  %s0 = inlined_call_operand.hbm [shape: f32[8,10], index: 0, kind: input, shape index: {}]
  %s1 = inlined_call_operand.hbm [shape: f32[128,384], index: 1, kind: input, shape index: {}]
  %s2 = inlined_call_operand.vmem [shape: f32[1,384], index: 2, kind: input, shape index: {}]
  %s3 = inlined_call_operand.hbm [shape: f32[8,5], index: 3, kind: output, shape index: {}]
  %s4 = sld [smem:[#allocation0]]
  $region30: #{tpu_custom_call.1} parent=0
    _
  %s6 = ssub.s32 1, %s4
  %s7 = scalar_select 0, %s6, %s4
  $region1: #{tpu_custom_call.1} parent=0
    #allocation2 [shape = 'u8[4096]{0}', space=vmem, size = 0x1000, scoped, tag = 'input window, operand 0, single buffered']
    #allocation3 [shape = 's32[1]{0}', space=sflag, size = 0x4, scoped, tag = 'scoped memory for tpu_custom_call.1']
    #allocation4 [shape = 's32[1]{0}', space=sflag, size = 0x4, scoped, tag = 'scoped memory for tpu_custom_call.1']
    #allocation5 [shape = 'u8[196608]{0}', space=vmem, size = 0x30000, scoped, tag = 'input window, operand 1, single buffered']
    #allocation6 [shape = 's32[1]{0}', space=sflag, size = 0x4, scoped, tag = 'scoped memory for tpu_custom_call.1']
    #allocation7 [shape = 'u8[4096]{0}', space=vmem, size = 0x1000, scoped, tag = 'output window, operand 0, single buffered']
    %8 = vsyncpa [#allocation3], 0
    %9 = vsyncpa [#allocation6], 0
    %10 = vsyncpa [#allocation4], 0
    // Predicated region
    $region2: #{tpu_custom_call.1} parent=1 // pred_check
      _
    $region3: #{tpu_custom_call.1} parent=1 // pred_check_branch
      %12 = sbr.rel (0) target = $region5
    $region4: #{tpu_custom_call.1} parent=1 // pred_region
      %s14 = ssub.s32 128, 128
      %15 = vsyncadd [#allocation3], %s14
      %s17 = sshll.u32 [#allocation2], 4
      %s18 = int_to_ptr.vmem [resolvable:$true] %s17
      %20 = dma.hbm_to_vmem [thread:$0]  %s0, 128, %s18, [#allocation3]
    $region5: #{tpu_custom_call.1} parent=1 // pred_fallthru
      _
    // Predicated region
    $region6: #{tpu_custom_call.1} parent=1 // pred_check
      _
    $region7: #{tpu_custom_call.1} parent=1 // pred_check_branch
      %22 = sbr.rel (0) target = $region9
    $region8: #{tpu_custom_call.1} parent=1 // pred_region
      %s24 = ssub.s32 6144, 6144
      %25 = vsyncadd [#allocation6], %s24
      %s26 = sshll.u32 [#allocation5], 4
      %s27 = int_to_ptr.vmem [resolvable:$true] %s26
      %32 = dma.hbm_to_vmem [thread:$0]  %s1, 6144, %s27, [#allocation6], 384, 384, 24
    $region9: #{tpu_custom_call.1} parent=1 // pred_fallthru
      _
    // Predicated region
    $region10: #{tpu_custom_call.1} parent=1 // pred_check
      _
    $region11: #{tpu_custom_call.1} parent=1 // pred_check_branch
      %34 = sbr.rel (0) target = $region13
    $region12: #{tpu_custom_call.1} parent=1 // pred_region
      _
    $region13: #{tpu_custom_call.1} parent=1 // pred_fallthru
      _
    // Predicated region
    $region14: #{tpu_custom_call.1} parent=1 // pred_check
      _
    $region15: #{tpu_custom_call.1} parent=1 // pred_check_branch
      %36 = sbr.rel (0) target = $region17
    $region16: #{tpu_custom_call.1} parent=1 // pred_region
      %37 = dma.done [#allocation3], 128
    $region17: #{tpu_custom_call.1} parent=1 // pred_fallthru
      _
    // Predicated region
    $region18: #{tpu_custom_call.1} parent=1 // pred_check
      _
    $region19: #{tpu_custom_call.1} parent=1 // pred_check_branch
      %39 = sbr.rel (0) target = $region21
    $region20: #{tpu_custom_call.1} parent=1 // pred_region
      %40 = dma.done [#allocation6], 6144
    $region21: #{tpu_custom_call.1} parent=1 // pred_fallthru
      _
    %v41 = vld [vmem:[#allocation2] sm:$0xff]
    %vm42 = vcmask 80896
    %v43 = vsel %vm42, %v41, 0.0
    %v44 = vld [vmem:[#allocation5] sm:$0xff]
    %v45 = vld [vmem:[#allocation5 + $0x18] sm:$0xff]
    %v46 = vld [vmem:[#allocation5 + $0x30] sm:$0xff]
    %v47 = vld [vmem:[#allocation5 + $0x48] sm:$0xff]
    %v48 = vld [vmem:[#allocation5 + $0x60] sm:$0xff]
    %v49 = vld [vmem:[#allocation5 + $0x78] sm:$0xff]
    %v50 = vld [vmem:[#allocation5 + $0x90] sm:$0xff]
    %v51 = vld [vmem:[#allocation5 + $0xa8] sm:$0xff]
    %v52 = vld [vmem:[#allocation5 + $0xc0] sm:$0xff]
    %v53 = vld [vmem:[#allocation5 + $0xd8] sm:$0xff]
    %v54 = vld [vmem:[#allocation5 + $0xf0] sm:$0xff]
    %v55 = vld [vmem:[#allocation5 + $0x108] sm:$0xff]
    %v56 = vld [vmem:[#allocation5 + $0x120] sm:$0xff]
    %v57 = vld [vmem:[#allocation5 + $0x138] sm:$0xff]
    %v58 = vld [vmem:[#allocation5 + $0x150] sm:$0xff]
    %v59 = vld [vmem:[#allocation5 + $0x168] sm:$0xff]
    %v60 = vld [vmem:[%s2] sm:$0x1]
    %v62 = vlaneseq
    %v63 = vshrl.u32 %v62, 7
    %v64 = vsub.s32 0, %v63
    %v65 = vrot.slane %v60, %v64
    %67 = vmatprep.subr.mxu0 0.0
    %68 = vmatpush1.msra.mxu0 %v44
    %69 = vmatprep.subr.mxu0 0.0
    %70 = vmatpush1.msra.mxu0 %v45
    %71 = vmatprep.subr.mxu0 0.0
    %72 = vmatpush1.msra.mxu0 %v46
    %73 = vmatprep.subr.mxu0 0.0
    %74 = vmatpush1.msra.mxu0 %v47
    %75 = vmatprep.subr.mxu0 0.0
    %76 = vmatpush1.msra.mxu0 %v48
    %77 = vmatprep.subr.mxu0 0.0
    %78 = vmatpush1.msra.mxu0 %v49
    %79 = vmatprep.subr.mxu0 0.0
    %80 = vmatpush1.msra.mxu0 %v50
    %81 = vmatprep.subr.mxu0 0.0
    %82 = vmatpush1.msra.mxu0 %v51
    %83 = vmatprep.subr.mxu0 0.0
    %84 = vmatpush1.msra.mxu0 %v52
    %85 = vmatprep.subr.mxu0 0.0
    %86 = vmatpush1.msra.mxu0 %v53
    %87 = vmatprep.subr.mxu0 0.0
    %88 = vmatpush1.msra.mxu0 %v54
    %89 = vmatprep.subr.mxu0 0.0
    %90 = vmatpush1.msra.mxu0 %v55
    %91 = vmatprep.subr.mxu0 0.0
    %92 = vmatpush1.msra.mxu0 %v56
    %93 = vmatprep.subr.mxu0 0.0
    %94 = vmatpush1.msra.mxu0 %v57
    %95 = vmatprep.subr.mxu0 0.0
    %96 = vmatpush1.msra.mxu0 %v58
    %97 = vmatprep.subr.mxu0 0.0
    %98 = vmatpush1.msra.mxu0 %v59
    %99 = vmatprep.subr.mxu0 0.0
    %100 = vmatpush1.msra.mxu0 0.0
    %101 = vmatprep.subr.mxu0 0.0
    %102 = vmatpush1.msra.mxu0 0.0
    %103 = vmatprep.subr.mxu0 0.0
    %104 = vmatpush1.msra.mxu0 0.0
    %105 = vmatprep.subr.mxu0 0.0
    %106 = vmatpush1.msra.mxu0 0.0
    %107 = vmatprep.subr.mxu0 0.0
    %108 = vmatpush1.msra.mxu0 0.0
    %109 = vmatprep.subr.mxu0 0.0
    %110 = vmatpush1.msra.mxu0 0.0
    %111 = vmatprep.subr.mxu0 0.0
    %112 = vmatpush1.msra.mxu0 0.0
    %113 = vmatprep.subr.mxu0 0.0
    %114 = vmatpush1.msra.mxu0 0.0
    %115 = vmatprep.subr.mxu0 0.0
    %116 = vmatpush1.msra.mxu0 0.0
    %117 = vmatprep.subr.mxu0 0.0
    %118 = vmatpush1.msra.mxu0 0.0
    %119 = vmatprep.subr.mxu0 0.0
    %120 = vmatpush1.msra.mxu0 0.0
    %121 = vmatprep.subr.mxu0 0.0
    %122 = vmatpush1.msra.mxu0 0.0
    %123 = vmatprep.subr.mxu0 0.0
    %124 = vmatpush1.msra.mxu0 0.0
    %125 = vmatprep.subr.mxu0 0.0
    %126 = vmatpush1.msra.mxu0 0.0
    %127 = vmatprep.subr.mxu0 0.0
    %128 = vmatpush1.msra.mxu0 0.0
    %129 = vmatprep.subr.mxu0 0.0
    %130 = vmatpush1.msra.mxu0 0.0
    %131 = vmatprep.mubr.f32.mxu0 0.0
    %132 = vmatmul.mubr.f32.gmra.mrb[0].mxu0 %v43
    %v133 = vpop.f32.mrb[0].mxu0
    %v134 = vadd.f32 %v65, %v133
    %v135 = vpop.f32.mrb[0].mxu0
    %136 = vdwg.mxu0
    %v137 = vmax.f32 %v134, 0.0
    %v138 = vld [vmem:[#allocation5 + $0x8] sm:$0xff]
    %v139 = vld [vmem:[#allocation5 + $0x20] sm:$0xff]
    %v140 = vld [vmem:[#allocation5 + $0x38] sm:$0xff]
    %v141 = vld [vmem:[#allocation5 + $0x50] sm:$0xff]
    %v142 = vld [vmem:[#allocation5 + $0x68] sm:$0xff]
    %v143 = vld [vmem:[#allocation5 + $0x80] sm:$0xff]
    %v144 = vld [vmem:[#allocation5 + $0x98] sm:$0xff]
    %v145 = vld [vmem:[#allocation5 + $0xb0] sm:$0xff]
    %v146 = vld [vmem:[#allocation5 + $0xc8] sm:$0xff]
    %v147 = vld [vmem:[#allocation5 + $0xe0] sm:$0xff]
    %v148 = vld [vmem:[#allocation5 + $0xf8] sm:$0xff]
    %v149 = vld [vmem:[#allocation5 + $0x110] sm:$0xff]
    %v150 = vld [vmem:[#allocation5 + $0x128] sm:$0xff]
    %v151 = vld [vmem:[#allocation5 + $0x140] sm:$0xff]
    %v152 = vld [vmem:[#allocation5 + $0x158] sm:$0xff]
    %v153 = vld [vmem:[#allocation5 + $0x170] sm:$0xff]
    %v154 = vld [vmem:[%s2 + $0x1] sm:$0x1]
    %v156 = vlaneseq
    %v157 = vshrl.u32 %v156, 7
    %v158 = vsub.s32 0, %v157
    %v159 = vrot.slane %v154, %v158
    %161 = vmatprep.subr.mxu0 0.0
    %162 = vmatpush1.msra.mxu0 %v138
    %163 = vmatprep.subr.mxu0 0.0
    %164 = vmatpush1.msra.mxu0 %v139
    %165 = vmatprep.subr.mxu0 0.0
    %166 = vmatpush1.msra.mxu0 %v140
    %167 = vmatprep.subr.mxu0 0.0
    %168 = vmatpush1.msra.mxu0 %v141
    %169 = vmatprep.subr.mxu0 0.0
    %170 = vmatpush1.msra.mxu0 %v142
    %171 = vmatprep.subr.mxu0 0.0
    %172 = vmatpush1.msra.mxu0 %v143
    %173 = vmatprep.subr.mxu0 0.0
    %174 = vmatpush1.msra.mxu0 %v144
    %175 = vmatprep.subr.mxu0 0.0
    %176 = vmatpush1.msra.mxu0 %v145
    %177 = vmatprep.subr.mxu0 0.0
    %178 = vmatpush1.msra.mxu0 %v146
    %179 = vmatprep.subr.mxu0 0.0
    %180 = vmatpush1.msra.mxu0 %v147
    %181 = vmatprep.subr.mxu0 0.0
    %182 = vmatpush1.msra.mxu0 %v148
    %183 = vmatprep.subr.mxu0 0.0
    %184 = vmatpush1.msra.mxu0 %v149
    %185 = vmatprep.subr.mxu0 0.0
    %186 = vmatpush1.msra.mxu0 %v150
    %187 = vmatprep.subr.mxu0 0.0
    %188 = vmatpush1.msra.mxu0 %v151
    %189 = vmatprep.subr.mxu0 0.0
    %190 = vmatpush1.msra.mxu0 %v152
    %191 = vmatprep.subr.mxu0 0.0
    %192 = vmatpush1.msra.mxu0 %v153
    %193 = vmatprep.subr.mxu0 0.0
    %194 = vmatpush1.msra.mxu0 0.0
    %195 = vmatprep.subr.mxu0 0.0
    %196 = vmatpush1.msra.mxu0 0.0
    %197 = vmatprep.subr.mxu0 0.0
    %198 = vmatpush1.msra.mxu0 0.0
    %199 = vmatprep.subr.mxu0 0.0
    %200 = vmatpush1.msra.mxu0 0.0
    %201 = vmatprep.subr.mxu0 0.0
    %202 = vmatpush1.msra.mxu0 0.0
    %203 = vmatprep.subr.mxu0 0.0
    %204 = vmatpush1.msra.mxu0 0.0
    %205 = vmatprep.subr.mxu0 0.0
    %206 = vmatpush1.msra.mxu0 0.0
    %207 = vmatprep.subr.mxu0 0.0
    %208 = vmatpush1.msra.mxu0 0.0
    %209 = vmatprep.subr.mxu0 0.0
    %210 = vmatpush1.msra.mxu0 0.0
    %211 = vmatprep.subr.mxu0 0.0
    %212 = vmatpush1.msra.mxu0 0.0
    %213 = vmatprep.subr.mxu0 0.0
    %214 = vmatpush1.msra.mxu0 0.0
    %215 = vmatprep.subr.mxu0 0.0
    %216 = vmatpush1.msra.mxu0 0.0
    %217 = vmatprep.subr.mxu0 0.0
    %218 = vmatpush1.msra.mxu0 0.0
    %219 = vmatprep.subr.mxu0 0.0
    %220 = vmatpush1.msra.mxu0 0.0
    %221 = vmatprep.subr.mxu0 0.0
    %222 = vmatpush1.msra.mxu0 0.0
    %223 = vmatprep.subr.mxu0 0.0
    %224 = vmatpush1.msra.mxu0 0.0
    %225 = vmatprep.mubr.f32.mxu0 0.0
    %226 = vmatmul.mubr.f32.gmra.mrb[0].mxu0 %v137
    %v227 = vpop.f32.mrb[0].mxu0
    %v228 = vadd.f32 %v159, %v227
    %v229 = vpop.f32.mrb[0].mxu0
    %230 = vdwg.mxu0
    %v231 = vmax.f32 %v228, 0.0
    %v232 = vld [vmem:[#allocation5 + $0x10] sm:$0xff]
    %v233 = vld [vmem:[#allocation5 + $0x28] sm:$0xff]
    %v234 = vld [vmem:[#allocation5 + $0x40] sm:$0xff]
    %v235 = vld [vmem:[#allocation5 + $0x58] sm:$0xff]
    %v236 = vld [vmem:[#allocation5 + $0x70] sm:$0xff]
    %v237 = vld [vmem:[#allocation5 + $0x88] sm:$0xff]
    %v238 = vld [vmem:[#allocation5 + $0xa0] sm:$0xff]
    %v239 = vld [vmem:[#allocation5 + $0xb8] sm:$0xff]
    %v240 = vld [vmem:[#allocation5 + $0xd0] sm:$0xff]
    %v241 = vld [vmem:[#allocation5 + $0xe8] sm:$0xff]
    %v242 = vld [vmem:[#allocation5 + $0x100] sm:$0xff]
    %v243 = vld [vmem:[#allocation5 + $0x118] sm:$0xff]
    %v244 = vld [vmem:[#allocation5 + $0x130] sm:$0xff]
    %v245 = vld [vmem:[#allocation5 + $0x148] sm:$0xff]
    %v246 = vld [vmem:[#allocation5 + $0x160] sm:$0xff]
    %v247 = vld [vmem:[#allocation5 + $0x178] sm:$0xff]
    %v248 = vld [vmem:[%s2 + $0x2] sm:$0x1]
    %v250 = vlaneseq
    %v251 = vshrl.u32 %v250, 7
    %v252 = vsub.s32 0, %v251
    %v253 = vrot.slane %v248, %v252
    %255 = vmatprep.subr.mxu0 0.0
    %256 = vmatpush1.msra.mxu0 %v232
    %257 = vmatprep.subr.mxu0 0.0
    %258 = vmatpush1.msra.mxu0 %v233
    %259 = vmatprep.subr.mxu0 0.0
    %260 = vmatpush1.msra.mxu0 %v234
    %261 = vmatprep.subr.mxu0 0.0
    %262 = vmatpush1.msra.mxu0 %v235
    %263 = vmatprep.subr.mxu0 0.0
    %264 = vmatpush1.msra.mxu0 %v236
    %265 = vmatprep.subr.mxu0 0.0
    %266 = vmatpush1.msra.mxu0 %v237
    %267 = vmatprep.subr.mxu0 0.0
    %268 = vmatpush1.msra.mxu0 %v238
    %269 = vmatprep.subr.mxu0 0.0
    %270 = vmatpush1.msra.mxu0 %v239
    %271 = vmatprep.subr.mxu0 0.0
    %272 = vmatpush1.msra.mxu0 %v240
    %273 = vmatprep.subr.mxu0 0.0
    %274 = vmatpush1.msra.mxu0 %v241
    %275 = vmatprep.subr.mxu0 0.0
    %276 = vmatpush1.msra.mxu0 %v242
    %277 = vmatprep.subr.mxu0 0.0
    %278 = vmatpush1.msra.mxu0 %v243
    %279 = vmatprep.subr.mxu0 0.0
    %280 = vmatpush1.msra.mxu0 %v244
    %281 = vmatprep.subr.mxu0 0.0
    %282 = vmatpush1.msra.mxu0 %v245
    %283 = vmatprep.subr.mxu0 0.0
    %284 = vmatpush1.msra.mxu0 %v246
    %285 = vmatprep.subr.mxu0 0.0
    %286 = vmatpush1.msra.mxu0 %v247
    %287 = vmatprep.subr.mxu0 0.0
    %288 = vmatpush1.msra.mxu0 0.0
    %289 = vmatprep.subr.mxu0 0.0
    %290 = vmatpush1.msra.mxu0 0.0
    %291 = vmatprep.subr.mxu0 0.0
    %292 = vmatpush1.msra.mxu0 0.0
    %293 = vmatprep.subr.mxu0 0.0
    %294 = vmatpush1.msra.mxu0 0.0
    %295 = vmatprep.subr.mxu0 0.0
    %296 = vmatpush1.msra.mxu0 0.0
    %297 = vmatprep.subr.mxu0 0.0
    %298 = vmatpush1.msra.mxu0 0.0
    %299 = vmatprep.subr.mxu0 0.0
    %300 = vmatpush1.msra.mxu0 0.0
    %301 = vmatprep.subr.mxu0 0.0
    %302 = vmatpush1.msra.mxu0 0.0
    %303 = vmatprep.subr.mxu0 0.0
    %304 = vmatpush1.msra.mxu0 0.0
    %305 = vmatprep.subr.mxu0 0.0
    %306 = vmatpush1.msra.mxu0 0.0
    %307 = vmatprep.subr.mxu0 0.0
    %308 = vmatpush1.msra.mxu0 0.0
    %309 = vmatprep.subr.mxu0 0.0
    %310 = vmatpush1.msra.mxu0 0.0
    %311 = vmatprep.subr.mxu0 0.0
    %312 = vmatpush1.msra.mxu0 0.0
    %313 = vmatprep.subr.mxu0 0.0
    %314 = vmatpush1.msra.mxu0 0.0
    %315 = vmatprep.subr.mxu0 0.0
    %316 = vmatpush1.msra.mxu0 0.0
    %317 = vmatprep.subr.mxu0 0.0
    %318 = vmatpush1.msra.mxu0 0.0
    %319 = vmatprep.mubr.f32.mxu0 0.0
    %320 = vmatmul.mubr.f32.gmra.mrb[0].mxu0 %v231
    %v321 = vpop.f32.mrb[0].mxu0
    %v322 = vadd.f32 %v253, %v321
    %v323 = vpop.f32.mrb[0].mxu0
    %324 = vdwg.mxu0
    %vm325 = vcmask 39936
    %326 = vst.msk [vmem:[#allocation7] sm:$0xff] %vm325, %v322
    // Predicated region
    $region22: #{tpu_custom_call.1} parent=1 // pred_check
      _
    $region23: #{tpu_custom_call.1} parent=1 // pred_check_branch
      %328 = sbr.rel (0) target = $region25
    $region24: #{tpu_custom_call.1} parent=1 // pred_region
      %s330 = ssub.s32 128, 128
      %331 = vsyncadd [#allocation4], %s330
      %s333 = sshll.u32 [#allocation7], 4
      %s334 = int_to_ptr.vmem [resolvable:$true] %s333
      %336 = dma.vmem_to_hbm [thread:$0]  %s334, 128, %s3, [#allocation4]
    $region25: #{tpu_custom_call.1} parent=1 // pred_fallthru
      _
    // Predicated region
    $region26: #{tpu_custom_call.1} parent=1 // pred_check
      _
    $region27: #{tpu_custom_call.1} parent=1 // pred_check_branch
      %338 = sbr.rel (0) target = $region29
    $region28: #{tpu_custom_call.1} parent=1 // pred_region
      %339 = dma.done [#allocation4], 128
    $region29: #{tpu_custom_call.1} parent=1 // pred_fallthru
      _
    %340 = vsyncpa [#allocation3], 1
    %341 = vsyncpa [#allocation6], 1
    %342 = vsyncpa [#allocation4], 1

</llo_original>
